<compile_context>
chip_gen: v7x
topology: tpu7x:2x2x1
jax: 0.10.0
libtpu: 0.0.40
codegen_flags: <defaults>
</compile_context>

<pallas_src>
import jax
import jax.numpy as jnp
from jax import lax
from jax.experimental import pallas as pl
from jax.experimental.pallas import tpu as pltpu

LN_EPS = 1e-5


def frame_embed_kernel(frame_ref, pos_ref, gamma_ref, beta_ref, out_ref):
    """One grid step: a (tB, tS, H) tile.

    frame_ref: (tB, tS, H)  frame features for this (batch-tile, seq-tile)
    pos_ref:   (tS, H)      position embeddings for this seq-tile
    gamma_ref: (1, H)       LayerNorm weight
    beta_ref:  (1, H)       LayerNorm bias
    out_ref:   (tB, tS, H)
    """
    x = frame_ref[...].astype(jnp.float32) + pos_ref[...].astype(jnp.float32)

    # Centered two-pass LayerNorm stats (matches PyTorch numerics; avoids
    # E[x^2]-mean^2 cancellation).  Reductions go to the XLU, rsqrt to the EUP,
    # both off the critical (memory) path of this bandwidth-bound kernel.
    inv_h = jnp.float32(1.0 / x.shape[-1])
    mean = jnp.sum(x, axis=-1, keepdims=True) * inv_h
    xc = x - mean
    var = jnp.sum(xc * xc, axis=-1, keepdims=True) * inv_h
    inv = lax.rsqrt(var + LN_EPS)

    gamma = gamma_ref[...].astype(jnp.float32)   # loaded once per tile
    beta = beta_ref[...].astype(jnp.float32)
    y = xc * inv * gamma + beta

    # Dropout: identity in inference mode.
    out_ref[...] = y.astype(out_ref.dtype)


def _target_tile_bytes():
    """Per-generation tile target (expressed as f32-element budget * 4)."""
    try:
        kind = jax.devices()[0].device_kind.lower().replace(" ", "")
    except Exception:  # pragma: no cover - device query should not fail
        kind = ""
    if "v7" in kind or "tpu7" in kind:
        return 4 << 20   # v7x: 3.2 TB/s HBM -> bigger tiles amortize step overhead
    return 2 << 20       # v5e / v6e: 2 MiB already hits ~85% of HBM roofline


def _choose_tiles(B, S, H, itemsize, target_bytes):
    """Pick (tB, tS) so the f32 working set per tile is ~target_bytes.

    tS is a multiple of the dtype-aware sublane quantum (or the full S extent);
    no divisibility of S is required -- the grid uses cdiv and Pallas masks the
    ragged last block.
    """
    quantum = max(8, 32 // max(1, itemsize))          # 8 f32 / 16 bf16 / 32 int8
    max_elems = max(target_bytes // 4, quantum * H)   # budget in f32 elements
    rows_budget = max(quantum, max_elems // max(1, H))

    if S <= rows_budget:
        tS = S                                        # full extent: always legal
    else:
        tS = max(quantum, (rows_budget // quantum) * quantum)

    tB = max(1, min(B, rows_budget // max(1, tS)))
    return tB, tS


def frame_embeddings(frame_feat, pos_emb_table, ln_gamma, ln_beta,
                     position_ids=None):
    """JAX wrapper.

    frame_feat:     [B, S, H]
    pos_emb_table:  [max_position_embeddings, H]
    ln_gamma/beta:  [H]
    position_ids:   optional [1, S] int positions (default arange(S))
    """
    B, S, H = frame_feat.shape
    dtype = frame_feat.dtype
    itemsize = jnp.dtype(dtype).itemsize

    # Glue: gather the position embeddings.
    if position_ids is None:
        pos_emb = pos_emb_table[:S]                    # static slice: free
    else:
        # TODO(synk): for truly per-call-dynamic position_ids, move this gather
        # into the kernel via scalar prefetch + pl.Element row-gather to avoid
        # materializing an extra [S, H] HBM buffer (low priority for typical B).
        pos_emb = pos_emb_table[jnp.asarray(position_ids).reshape(-1)[:S]]
    pos_emb = pos_emb.astype(dtype)                    # [S, H]

    gamma2 = ln_gamma.reshape(1, H)
    beta2 = ln_beta.reshape(1, H)

    tB, tS = _choose_tiles(B, S, H, itemsize, _target_tile_bytes())
    num_s = pl.cdiv(S, tS)
    num_b = pl.cdiv(B, tB)

    # VMEM budget: double-buffered frame/out/pos tiles + params + the
    # block-sized f32 intermediates Mosaic materializes (x, x-mean, y) + slack.
    blk_in = tB * tS * H * itemsize
    blk_pos = tS * H * itemsize
    blk_f32 = tB * tS * H * 4
    params = 2 * 2 * (2 * H * itemsize)
    vmem_need = 2 * (2 * blk_in + blk_pos) + params + 3 * blk_f32
    vmem_limit = int(min(max(vmem_need + (2 << 20), 8 << 20), 48 << 20))

    grid_spec = pltpu.PrefetchScalarGridSpec(
        num_scalar_prefetch=0,
        # Batch innermost: the pos tile's block index depends only on s, so it
        # is DMA'd once per s-tile and reused across the inner batch loop.
        # Both axes are "parallel" (each output block written exactly once) so
        # v7x can shard the grid across its two TensorCores.
        grid=(num_s, num_b),
        in_specs=[
            pl.BlockSpec((tB, tS, H), lambda s, b: (b, s, 0)),   # frame_feat
            pl.BlockSpec((tS, H), lambda s, b: (s, 0)),          # pos_emb
            pl.BlockSpec((1, H), lambda s, b: (0, 0)),           # gamma
            pl.BlockSpec((1, H), lambda s, b: (0, 0)),           # beta
        ],
        out_specs=pl.BlockSpec((tB, tS, H), lambda s, b: (b, s, 0)),
    )

    return pl.pallas_call(
        frame_embed_kernel,
        out_shape=jax.ShapeDtypeStruct((B, S, H), dtype),
        grid_spec=grid_spec,
        compiler_params=pltpu.CompilerParams(
            dimension_semantics=("parallel", "parallel"),
            vmem_limit_bytes=vmem_limit),
    )(frame_feat, pos_emb, gamma2, beta2)


def frame_embeddings_ref(frame_feat, pos_emb, ln_gamma, ln_beta):
    """Pure-JAX reference. pos_emb is the gathered [S, H] slab."""
    x = frame_feat + pos_emb[None]
    mean = jnp.mean(x, axis=-1, keepdims=True)
    var = jnp.mean((x - mean) ** 2, axis=-1, keepdims=True)
    y = (x - mean) * lax.rsqrt(var + LN_EPS)
    return y * ln_gamma + ln_beta


if __name__ == "__main__":
    # Small config: batch=2, seq=8, hidden=32, max_position_embeddings=16.
    B, S, H = 2, 8, 32
    MAX_POS = 16

    key = jax.random.PRNGKey(0)
    k_feat, k_pos = jax.random.split(key)

    frame_feat = jax.random.normal(k_feat, (B, S, H), dtype=jnp.float32)
    # Deterministic parameter init (nn.Embedding ~ N(0,1); LayerNorm: ones/zeros).
    pos_emb_table = jax.random.normal(k_pos, (MAX_POS, H), dtype=jnp.float32)
    ln_gamma = jnp.ones((H,), dtype=jnp.float32)
    ln_beta = jnp.zeros((H,), dtype=jnp.float32)

    # Default (arange) position_ids path.
    out = frame_embeddings(frame_feat, pos_emb_table, ln_gamma, ln_beta)
    out = jax.block_until_ready(out)
    ref = frame_embeddings_ref(frame_feat, pos_emb_table[:S], ln_gamma, ln_beta)
    assert out.shape == (B, S, H)
    assert jnp.allclose(out, ref, atol=1e-4, rtol=1e-4), "mismatch (default ids)"

    # Explicit position_ids path (gather in the wrapper).
    position_ids = jnp.arange(S - 1, -1, -1, dtype=jnp.int32)[None, :]
    out2 = frame_embeddings(frame_feat, pos_emb_table, ln_gamma, ln_beta,
                            position_ids=position_ids)
    out2 = jax.block_until_ready(out2)
    ref2 = frame_embeddings_ref(frame_feat, pos_emb_table[position_ids[0]],
                                ln_gamma, ln_beta)
    assert jnp.allclose(out2, ref2, atol=1e-4, rtol=1e-4), "mismatch (explicit ids)"

    print("KERNEL_OK")
</pallas_src>

<mosaic_0001>
module attributes {stable_mosaic.version = 11 : i64} {
  func.func @frame_embed_kernel(%arg0: i32, %arg1: i32, %arg2: memref<2x8x32xf32, #tpu.memory_space<vmem>>, %arg3: memref<8x32xf32, #tpu.memory_space<vmem>>, %arg4: memref<1x32xf32, #tpu.memory_space<vmem>>, %arg5: memref<1x32xf32, #tpu.memory_space<vmem>>, %arg6: memref<2x8x32xf32, #tpu.memory_space<vmem>>) attributes {dimension_semantics = [#tpu.dimension_semantics<parallel>, #tpu.dimension_semantics<parallel>], iteration_bounds = array<i64: 1, 1>, scalar_prefetch = 0 : i64, scratch_operands = 0 : i64, tpu.core_type = #tpu.core_type<tc>, window_params = [{transform_indices = @transform_0, window_bounds = array<i64: 2, 8, 32>}, {transform_indices = @transform_1, window_bounds = array<i64: 8, 32>}, {pipeline_mode = #tpu.pipeline_mode<synchronous>, transform_indices = @transform_2, window_bounds = array<i64: 1, 32>}, {pipeline_mode = #tpu.pipeline_mode<synchronous>, transform_indices = @transform_3, window_bounds = array<i64: 1, 32>}, {transform_indices = @transform_4, window_bounds = array<i64: 2, 8, 32>}]} {
    %c0 = arith.constant 0 : index
    %c0_0 = arith.constant 0 : index
    %c0_1 = arith.constant 0 : index
    %0 = vector.load %arg2[%c0, %c0_0, %c0_1] : memref<2x8x32xf32, #tpu.memory_space<vmem>>, vector<2x8x32xf32>
    %c0_2 = arith.constant 0 : index
    %c0_3 = arith.constant 0 : index
    %1 = vector.load %arg3[%c0_2, %c0_3] : memref<8x32xf32, #tpu.memory_space<vmem>>, vector<8x32xf32>
    %2 = vector.shape_cast %1 : vector<8x32xf32> to vector<1x8x32xf32>
    %3 = vector.broadcast %2 : vector<1x8x32xf32> to vector<2x8x32xf32>
    %4 = arith.addf %0, %3 : vector<2x8x32xf32>
    %cst = arith.constant dense<0.000000e+00> : vector<2x8xf32>
    %5 = vector.multi_reduction <add>, %4, %cst [2] : vector<2x8x32xf32> to vector<2x8xf32>
    %6 = vector.shape_cast %5 : vector<2x8xf32> to vector<2x8x1xf32>
    %cst_4 = arith.constant 3.125000e-02 : f32
    %7 = vector.broadcast %cst_4 : f32 to vector<2x8x1xf32>
    %8 = arith.mulf %6, %7 : vector<2x8x1xf32>
    %9 = vector.broadcast %8 : vector<2x8x1xf32> to vector<2x8x32xf32>
    %10 = arith.subf %4, %9 : vector<2x8x32xf32>
    %11 = arith.mulf %10, %10 : vector<2x8x32xf32>
    %cst_5 = arith.constant dense<0.000000e+00> : vector<2x8xf32>
    %12 = vector.multi_reduction <add>, %11, %cst_5 [2] : vector<2x8x32xf32> to vector<2x8xf32>
    %13 = vector.shape_cast %12 : vector<2x8xf32> to vector<2x8x1xf32>
    %cst_6 = arith.constant 3.125000e-02 : f32
    %14 = vector.broadcast %cst_6 : f32 to vector<2x8x1xf32>
    %15 = arith.mulf %13, %14 : vector<2x8x1xf32>
    %cst_7 = arith.constant 9.99999974E-6 : f32
    %16 = vector.broadcast %cst_7 : f32 to vector<2x8x1xf32>
    %17 = arith.addf %15, %16 : vector<2x8x1xf32>
    %18 = math.rsqrt %17 : vector<2x8x1xf32>
    %c0_8 = arith.constant 0 : index
    %c0_9 = arith.constant 0 : index
    %19 = vector.load %arg4[%c0_8, %c0_9] : memref<1x32xf32, #tpu.memory_space<vmem>>, vector<1x32xf32>
    %c0_10 = arith.constant 0 : index
    %c0_11 = arith.constant 0 : index
    %20 = vector.load %arg5[%c0_10, %c0_11] : memref<1x32xf32, #tpu.memory_space<vmem>>, vector<1x32xf32>
    %21 = vector.broadcast %18 : vector<2x8x1xf32> to vector<2x8x32xf32>
    %22 = arith.mulf %10, %21 : vector<2x8x32xf32>
    %23 = vector.shape_cast %19 : vector<1x32xf32> to vector<1x1x32xf32>
    %24 = vector.broadcast %23 : vector<1x1x32xf32> to vector<2x8x32xf32>
    %25 = arith.mulf %22, %24 : vector<2x8x32xf32>
    %26 = vector.shape_cast %20 : vector<1x32xf32> to vector<1x1x32xf32>
    %27 = vector.broadcast %26 : vector<1x1x32xf32> to vector<2x8x32xf32>
    %28 = arith.addf %25, %27 : vector<2x8x32xf32>
    %c0_12 = arith.constant 0 : index
    %c0_13 = arith.constant 0 : index
    %c0_14 = arith.constant 0 : index
    %29 = vector.load %arg6[%c0_12, %c0_13, %c0_14] : memref<2x8x32xf32, #tpu.memory_space<vmem>>, vector<2x8x32xf32>
    tpu.vector_store %arg6[%c0_12, %c0_13, %c0_14], %28 {strides = array<i32>} : memref<2x8x32xf32, #tpu.memory_space<vmem>>, vector<2x8x32xf32>,
    return
  }
  func.func @transform_0(%arg0: i32, %arg1: i32) -> (i32, i32, i32) {
    %c0_i32 = arith.constant 0 : i32
    %c0_i32_0 = arith.constant 0 : i32
    return %arg1, %arg0, %c0_i32 : i32, i32, i32
  }
  func.func @transform_1(%arg0: i32, %arg1: i32) -> (i32, i32) {
    %c0_i32 = arith.constant 0 : i32
    %c0_i32_0 = arith.constant 0 : i32
    return %arg0, %c0_i32 : i32, i32
  }
  func.func @transform_2(%arg0: i32, %arg1: i32) -> (i32, i32) {
    %c0_i32 = arith.constant 0 : i32
    %c0_i32_0 = arith.constant 0 : i32
    %c0_i32_1 = arith.constant 0 : i32
    return %c0_i32, %c0_i32_0 : i32, i32
  }
  func.func @transform_3(%arg0: i32, %arg1: i32) -> (i32, i32) {
    %c0_i32 = arith.constant 0 : i32
    %c0_i32_0 = arith.constant 0 : i32
    %c0_i32_1 = arith.constant 0 : i32
    return %c0_i32, %c0_i32_0 : i32, i32
  }
  func.func @transform_4(%arg0: i32, %arg1: i32) -> (i32, i32, i32) {
    %c0_i32 = arith.constant 0 : i32
    %c0_i32_0 = arith.constant 0 : i32
    return %arg1, %arg0, %c0_i32 : i32, i32, i32
  }
}

</mosaic_0001>

<llo_original>
// kernel: tpu_custom_call.1
$region0: #{tpu_custom_call.1}
  #allocation0 [shape = 'u32[]', space=smem, size = 0x4, offset = 0x4, fixed_abs, tag = 'smem constant byte address 0x4 - core index']
  #allocation1 [shape = 'u32[144,128]{1,0:T(1,128)}', space=vmem, size = 0x12000, scoped, tag = 'internal scratch']
  %s0 = inlined_call_operand.hbm [shape: f32[2,8,32], index: 0, kind: input, shape index: {}]
  %s1 = inlined_call_operand.hbm [shape: f32[8,32], index: 1, kind: input, shape index: {}]
  %s2 = inlined_call_operand.vmem [shape: f32[1,32], index: 2, kind: input, shape index: {}]
  %s3 = inlined_call_operand.vmem [shape: f32[1,32], index: 3, kind: input, shape index: {}]
  %s4 = inlined_call_operand.hbm [shape: f32[2,8,32], index: 4, kind: output, shape index: {}]
  %s5 = sld [smem:[#allocation0]]
  $region34: #{tpu_custom_call.1} parent=0
    _
  %s7 = ssub.s32 1, %s5
  %s8 = scalar_select 0, %s7, %s5
  $region1: #{tpu_custom_call.1} parent=0
    #allocation2 [shape = 'u8[8192]{0}', space=vmem, size = 0x2000, scoped, tag = 'input window, operand 0, single buffered']
    #allocation3 [shape = 's32[1]{0}', space=sflag, size = 0x4, scoped, tag = 'scoped memory for tpu_custom_call.1']
    #allocation4 [shape = 's32[1]{0}', space=sflag, size = 0x4, scoped, tag = 'scoped memory for tpu_custom_call.1']
    #allocation5 [shape = 'u8[4096]{0}', space=vmem, size = 0x1000, scoped, tag = 'input window, operand 1, single buffered']
    #allocation6 [shape = 's32[1]{0}', space=sflag, size = 0x4, scoped, tag = 'scoped memory for tpu_custom_call.1']
    #allocation7 [shape = 'u8[8192]{0}', space=vmem, size = 0x2000, scoped, tag = 'output window, operand 0, single buffered']
    %9 = vsyncpa [#allocation3], 0
    %10 = vsyncpa [#allocation6], 0
    %11 = vsyncpa [#allocation4], 0
    // Predicated region
    $region2: #{tpu_custom_call.1} parent=1 // pred_check
      _
    $region3: #{tpu_custom_call.1} parent=1 // pred_check_branch
      %13 = sbr.rel (0) target = $region5
    $region4: #{tpu_custom_call.1} parent=1 // pred_region
      %s15 = ssub.s32 256, 256
      %16 = vsyncadd [#allocation3], %s15
      %s17 = sshll.u32 [#allocation2], 4
      %s18 = int_to_ptr.vmem [resolvable:$true] %s17
      %23 = dma.hbm_to_vmem [thread:$0]  %s0, 256, %s18, [#allocation3], 128, 128, 8
    $region5: #{tpu_custom_call.1} parent=1 // pred_fallthru
      _
    // Predicated region
    $region6: #{tpu_custom_call.1} parent=1 // pred_check
      _
    $region7: #{tpu_custom_call.1} parent=1 // pred_check_branch
      %25 = sbr.rel (0) target = $region9
    $region8: #{tpu_custom_call.1} parent=1 // pred_region
      %s27 = ssub.s32 128, 128
      %28 = vsyncadd [#allocation6], %s27
      %s30 = sshll.u32 [#allocation5], 4
      %s31 = int_to_ptr.vmem [resolvable:$true] %s30
      %33 = dma.hbm_to_vmem [thread:$0]  %s1, 128, %s31, [#allocation6]
    $region9: #{tpu_custom_call.1} parent=1 // pred_fallthru
      _
    // Predicated region
    $region10: #{tpu_custom_call.1} parent=1 // pred_check
      _
    $region11: #{tpu_custom_call.1} parent=1 // pred_check_branch
      %35 = sbr.rel (0) target = $region13
    $region12: #{tpu_custom_call.1} parent=1 // pred_region
      _
    $region13: #{tpu_custom_call.1} parent=1 // pred_fallthru
      _
    // Predicated region
    $region14: #{tpu_custom_call.1} parent=1 // pred_check
      _
    $region15: #{tpu_custom_call.1} parent=1 // pred_check_branch
      %37 = sbr.rel (0) target = $region17
    $region16: #{tpu_custom_call.1} parent=1 // pred_region
      _
    $region17: #{tpu_custom_call.1} parent=1 // pred_fallthru
      _
    // Predicated region
    $region18: #{tpu_custom_call.1} parent=1 // pred_check
      _
    $region19: #{tpu_custom_call.1} parent=1 // pred_check_branch
      %39 = sbr.rel (0) target = $region21
    $region20: #{tpu_custom_call.1} parent=1 // pred_region
      %40 = dma.done [#allocation3], 256
    $region21: #{tpu_custom_call.1} parent=1 // pred_fallthru
      _
    // Predicated region
    $region22: #{tpu_custom_call.1} parent=1 // pred_check
      _
    $region23: #{tpu_custom_call.1} parent=1 // pred_check_branch
      %42 = sbr.rel (0) target = $region25
    $region24: #{tpu_custom_call.1} parent=1 // pred_region
      %43 = dma.done [#allocation6], 128
    $region25: #{tpu_custom_call.1} parent=1 // pred_fallthru
      _
    %v44 = vld [vmem:[#allocation2] sm:$0xff]
    %v45 = vld [vmem:[#allocation2 + $0x8] sm:$0xff]
    %v46 = vld [vmem:[#allocation5] sm:$0xff]
    %v47 = vadd.f32 %v44, %v46
    %v48 = vadd.f32 %v45, %v46
    %vm49 = vcmask 261120
    %v50 = vsel %vm49, %v47, 0.0
    %51 = vadd.xlane.f32.xlu0 %v50
    %v52 = vpop.xlane.xlu0 %51
    %v53 = vsel %vm49, %v48, 0.0
    %54 = vadd.xlane.f32.xlu0 %v53
    %v55 = vpop.xlane.xlu0 %54
    %v56 = vmul.f32 %v52, 0.03125
    %v57 = vmul.f32 %v55, 0.03125
    %v58 = vsub.f32 %v47, %v56
    %v59 = vsub.f32 %v48, %v57
    %v60 = vmul.f32 %v58, %v58
    %v61 = vmul.f32 %v59, %v59
    %v62 = vsel %vm49, %v60, 0.0
    %63 = vadd.xlane.f32.xlu0 %v62
    %v64 = vpop.xlane.xlu0 %63
    %v65 = vsel %vm49, %v61, 0.0
    %66 = vadd.xlane.f32.xlu0 %v65
    %v67 = vpop.xlane.xlu0 %66
    %v68 = vmul.f32 %v64, 0.03125
    %v69 = vmul.f32 %v67, 0.03125
    %v70 = vadd.f32 %v68, 1e-05
    %v71 = vadd.f32 %v69, 1e-05
    %v72 = vrsqrt.pop %v70
    %v73 = vrsqrt.pop %v71
    %v74 = vld [vmem:[%s2] sm:$0x1]
    %v75 = vld [vmem:[%s3] sm:$0x1]
    %v76 = vmul.f32 %v58, %v72
    %v77 = vmul.f32 %v59, %v73
    %v79 = vlaneseq
    %v80 = vshrl.u32 %v79, 7
    %v81 = vsub.s32 0, %v80
    %v82 = vrot.slane %v74, %v81
    %v84 = vmul.f32 %v76, %v82
    %v85 = vmul.f32 %v77, %v82
    %v87 = vlaneseq
    %v88 = vshrl.u32 %v87, 7
    %v89 = vsub.s32 0, %v88
    %v90 = vrot.slane %v75, %v89
    %v92 = vadd.f32 %v84, %v90
    %v93 = vadd.f32 %v85, %v90
    %94 = vst.msk [vmem:[#allocation7] sm:$0xff] %vm49, %v92
    %95 = vst.msk [vmem:[#allocation7 + $0x8] sm:$0xff] %vm49, %v93
    // Predicated region
    $region26: #{tpu_custom_call.1} parent=1 // pred_check
      _
    $region27: #{tpu_custom_call.1} parent=1 // pred_check_branch
      %97 = sbr.rel (0) target = $region29
    $region28: #{tpu_custom_call.1} parent=1 // pred_region
      %s99 = ssub.s32 256, 256
      %100 = vsyncadd [#allocation4], %s99
      %s101 = sshll.u32 [#allocation7], 4
      %s102 = int_to_ptr.vmem [resolvable:$true] %s101
      %107 = dma.vmem_to_hbm [thread:$0]  %s102, 256, %s4, [#allocation4], 128, 128, 8
    $region29: #{tpu_custom_call.1} parent=1 // pred_fallthru
      _
    // Predicated region
    $region30: #{tpu_custom_call.1} parent=1 // pred_check
      _
    $region31: #{tpu_custom_call.1} parent=1 // pred_check_branch
      %109 = sbr.rel (0) target = $region33
    $region32: #{tpu_custom_call.1} parent=1 // pred_region
      %110 = dma.done [#allocation4], 256
    $region33: #{tpu_custom_call.1} parent=1 // pred_fallthru
      _
    %111 = vsyncpa [#allocation3], 1
    %112 = vsyncpa [#allocation6], 1
    %113 = vsyncpa [#allocation4], 1

</llo_original>
